<compile_context>
chip_gen: v7x
topology: tpu7x:2x2x1
jax: 0.10.0
libtpu: 0.0.40
codegen_flags: <defaults>
</compile_context>

<pallas_src>
import functools

import numpy as np
import jax
import jax.numpy as jnp
from jax import lax
from jax.experimental import pallas as pl
from jax.experimental.pallas import tpu as pltpu

# --- default hyper-parameters of CombinedViolationNormalLoss ---
FOCAL_WEIGHT = 1.0
ALPHA_VIOLATION = 3.0            # alpha_normal = 1.0 (defaults)
TEMPERATURE = 0.07
INV_TEMPERATURE = 1.0 / TEMPERATURE
MARGIN_CONTRAST = 1.0
LAMBDA_CONTRAST = 0.5
MARGIN_BOUNDARY = 2.0
LAMBDA_BOUNDARY = 0.3
MARGIN_TRIPLET = 1.0
LAMBDA_TRIPLET = 0.2
PAIRWISE_EPS = 1e-6              # torch F.pairwise_distance eps
NORM_EPS = 1e-12                 # torch F.normalize eps
NEG = -1e30                      # finite "-inf" sentinel for masked maxima


def _round_up(x, m):
    return ((x + m - 1) // m) * m


def combined_loss_kernel(logits_ref, feats_ref, lab_col_ref, lab_row_ref,
                         out_ref, fn_ref, *, inv_b, n_valid, tm, n_tiles):
    f32 = jnp.float32
    logits = logits_ref[...].astype(f32)          # (Bp, C)
    labels = lab_col_ref[...]                     # (Bp, 1) int32
    Bp, C = logits.shape

    # ------------------------------------------------ masks, counts, recips
    mask_n = (labels == 0).astype(f32)            # (Bp, 1)
    mask_v = (labels == 2).astype(f32)            # (Bp, 1)
    cnt_n = jnp.sum(mask_n, axis=0, keepdims=True)
    cnt_v = jnp.sum(mask_v, axis=0, keepdims=True)
    inv_n = 1.0 / jnp.maximum(cnt_n, 1.0)         # computed once, reused
    inv_v = 1.0 / jnp.maximum(cnt_v, 1.0)
    any_n = (cnt_n > 0.0).astype(f32)
    any_v = (cnt_v > 0.0).astype(f32)
    both = any_n * any_v
    gt1_n = (cnt_n > 1.0).astype(f32)
    gt1_v = (cnt_v > 1.0).astype(f32)

    # ------------------------------------------ focal loss (valid rows only)
    valid = (lax.broadcasted_iota(jnp.int32, (Bp, 1), 0) < n_valid).astype(f32)
    m = jnp.max(logits, axis=1, keepdims=True)
    lse = m + jnp.log(jnp.sum(jnp.exp(logits - m), axis=1, keepdims=True))
    col = lax.broadcasted_iota(jnp.int32, (Bp, C), 1)
    picked = jnp.sum(logits * (col == labels).astype(f32), axis=1, keepdims=True)
    ce = lse - picked
    pt = jnp.exp(-ce)
    omp = 1.0 - pt
    pow2 = omp * omp
    pow3 = pow2 * omp
    is_v = labels == 2
    focal = jnp.where(is_v, ALPHA_VIOLATION, 1.0) * jnp.where(is_v, pow3, pow2) * ce
    base = jnp.sum(focal * valid, axis=0, keepdims=True) * inv_b      # (1,1)

    # ------------------------------- L2-normalized features (rsqrt, no div)
    feats = feats_ref[...].astype(f32)                                # (Bp, H)
    ssq = jnp.sum(feats * feats, axis=1, keepdims=True)
    fnorm = feats * lax.rsqrt(jnp.maximum(ssq, NORM_EPS * NORM_EPS))
    fn_ref[...] = fnorm            # stash in VMEM scratch for row-tile slicing

    # ---------------------------------------------------------- boundary
    n_log = logits[:, 0:1]
    v_log = logits[:, 2:3]
    bn = jnp.sum(jnp.maximum(v_log - n_log + MARGIN_BOUNDARY, 0.0) * mask_n,
                 axis=0, keepdims=True) * inv_n
    bv = jnp.sum(jnp.maximum(n_log - v_log + MARGIN_BOUNDARY, 0.0) * mask_v,
                 axis=0, keepdims=True) * inv_v
    boundary = any_n * bn + any_v * bv

    # ------------------------------------------------------------ triplet
    n_center = jnp.sum(fnorm * mask_n, axis=0, keepdims=True) * inv_n  # (1,H)
    v_center = jnp.sum(fnorm * mask_v, axis=0, keepdims=True) * inv_v
    dn = fnorm - n_center + PAIRWISE_EPS
    dv = fnorm - v_center + PAIRWISE_EPS
    d_n = jnp.sqrt(jnp.sum(dn * dn, axis=1, keepdims=True))
    d_v = jnp.sqrt(jnp.sum(dv * dv, axis=1, keepdims=True))
    triplet = (jnp.sum(jnp.maximum(d_n - d_v + MARGIN_TRIPLET, 0.0) * mask_n,
                       axis=0, keepdims=True) * inv_n
               + jnp.sum(jnp.maximum(d_v - d_n + MARGIN_TRIPLET, 0.0) * mask_v,
                         axis=0, keepdims=True) * inv_v)

    # --------------------- contrastive + separation, tiled over row blocks
    def tile_body(t, carry):
        acc_v, acc_n, acc_sep = carry
        off = pl.multiple_of(t * tm, tm)
        # 1/T folded into the LHS operand (tm*H mults instead of tm*Bp divs).
        lhs = fn_ref[pl.ds(off, tm), :] * INV_TEMPERATURE             # (tm, H)
        rhs = fn_ref[...]                                             # (Bp, H)
        sim = lax.dot_general(lhs, rhs, (((1,), (1,)), ((), ())),
                              preferred_element_type=f32)             # (tm, Bp)

        lab_row = lab_row_ref[...]                                    # (1, Bp)
        is_v_col = lab_row == 2
        is_n_col = lab_row == 0
        row_g = off + lax.broadcasted_iota(jnp.int32, (tm, Bp), 0)
        col_g = lax.broadcasted_iota(jnp.int32, (tm, Bp), 1)
        sim_nd = jnp.where(row_g == col_g, NEG, sim)                  # diag removed

        viol_pos = jnp.max(jnp.where(is_v_col, sim_nd, NEG), axis=1, keepdims=True)
        viol_neg = jnp.max(jnp.where(is_n_col, sim, NEG), axis=1, keepdims=True)
        norm_pos = jnp.max(jnp.where(is_n_col, sim_nd, NEG), axis=1, keepdims=True)
        norm_neg = jnp.max(jnp.where(is_v_col, sim, NEG), axis=1, keepdims=True)

        # Hinge masked to 0 when the "positive" set is empty (class count <= 1),
        # so no huge sentinel-driven values ever enter the accumulators.
        v_h = jnp.where(viol_pos > 0.5 * NEG,
                        jnp.maximum(viol_neg - viol_pos + MARGIN_CONTRAST, 0.0), 0.0)
        n_h = jnp.where(norm_pos > 0.5 * NEG,
                        jnp.maximum(norm_neg - norm_pos + MARGIN_CONTRAST, 0.0), 0.0)

        lab_t = lab_col_ref[pl.ds(off, tm), :]                        # (tm, 1)
        mv_t = (lab_t == 2).astype(f32)
        mn_t = (lab_t == 0).astype(f32)

        sep_row = jnp.sum(jnp.where(is_n_col,
                                    jnp.maximum(sim + MARGIN_CONTRAST, 0.0), 0.0),
                          axis=1, keepdims=True)                      # (tm, 1)

        acc_v = acc_v + jnp.sum(v_h * mv_t, axis=0, keepdims=True)
        acc_n = acc_n + jnp.sum(n_h * mn_t, axis=0, keepdims=True)
        acc_sep = acc_sep + jnp.sum(sep_row * mv_t, axis=0, keepdims=True)
        return acc_v, acc_n, acc_sep

    zero = jnp.zeros((1, 1), f32)
    acc_v, acc_n, acc_sep = lax.fori_loop(0, n_tiles, tile_body, (zero, zero, zero))

    sep = acc_sep * (1.0 / jnp.maximum(cnt_v * cnt_n, 1.0))
    contrast = gt1_v * acc_v * inv_v + gt1_n * acc_n * inv_n + sep

    total = FOCAL_WEIGHT * base
    # Contrastive branch replaces total with base + lambda*contrast only when
    # both classes are present (focal_weight defaults to 1.0 in the module).
    total = jnp.where(both > 0.0, base + LAMBDA_CONTRAST * contrast, total)
    total = total + LAMBDA_BOUNDARY * boundary
    total = total + both * LAMBDA_TRIPLET * triplet

    # -------------------- pack the six scalars into one lane vector (1 store)
    lane = lax.broadcasted_iota(jnp.int32, (1, 8), 1)
    packed = (jnp.where(lane == 0, total, 0.0)
              + jnp.where(lane == 1, base, 0.0)
              + jnp.where(lane == 2, both * contrast, 0.0)
              + jnp.where(lane == 3, boundary, 0.0)
              + jnp.where(lane == 4, both * triplet, 0.0)
              + jnp.where(lane == 5, both * sep, 0.0))
    out_ref[...] = packed


def combined_violation_normal_loss(logits, features, labels, *, row_tile=128):
    """Forward pass of CombinedViolationNormalLoss.

    Returns (total_loss, loss_dict) where all entries are device arrays
    (no host syncs); safe to call under jax.jit / inside larger programs.
    """
    B, _ = logits.shape
    H = features.shape[1]
    tm = min(_round_up(B, 8), _round_up(max(row_tile, 8), 8))
    Bp = _round_up(B, tm)
    n_tiles = Bp // tm
    pad = Bp - B

    logits_p = jnp.pad(logits.astype(jnp.float32), ((0, pad), (0, 0)))
    feats_p = jnp.pad(features.astype(jnp.float32), ((0, pad), (0, 0)))
    lab = labels.astype(jnp.int32).reshape(B)
    lab_p = jnp.pad(lab, (0, pad), constant_values=1)   # class 1: excluded by all masks
    lab_col = lab_p.reshape(Bp, 1)
    lab_row = lab_p.reshape(1, Bp)

    kernel = functools.partial(combined_loss_kernel, inv_b=1.0 / B, n_valid=B,
                               tm=tm, n_tiles=n_tiles)
    out = pl.pallas_call(
        kernel,
        out_shape=jax.ShapeDtypeStruct((1, 8), jnp.float32),
        in_specs=[pl.BlockSpec(memory_space=pltpu.MemorySpace.VMEM)] * 4,
        out_specs=pl.BlockSpec(memory_space=pltpu.MemorySpace.VMEM),
        scratch_shapes=[pltpu.VMEM((Bp, H), jnp.float32)],
    )(logits_p, feats_p, lab_col, lab_row)

    total = out[0, 0]
    loss_dict = {
        "focal_loss": out[0, 1],
        "base_loss": out[0, 1],
        "contrast_loss": out[0, 2],
        "separation_loss": out[0, 5],
        "boundary_loss": out[0, 3],
        "triplet_loss": out[0, 4],
        "total_loss": out[0, 0],
    }
    return total, loss_dict


# ------------------------ NumPy reference (mirrors the PyTorch code) ---------
def reference_loss_numpy(logits, features, labels):
    B = logits.shape[0]
    m = logits.max(axis=1, keepdims=True)
    lse = m[:, 0] + np.log(np.exp(logits - m).sum(axis=1))
    picked = logits[np.arange(B), labels]
    ce = lse - picked
    pt = np.exp(-ce)
    alpha = np.ones(B); gamma = np.full(B, 2.0)
    alpha[labels == 2] = ALPHA_VIOLATION; gamma[labels == 2] = 3.0
    base = float((alpha * (1 - pt) ** gamma * ce).mean())
    total = FOCAL_WEIGHT * base

    nm = labels == 0
    vm = labels == 2
    nf = features[nm]
    vf = features[vm]

    def l2norm(x):
        n = np.sqrt((x * x).sum(axis=1, keepdims=True))
        return x / np.maximum(n, NORM_EPS)

    if nm.any() and vm.any():
        nfn = l2norm(nf); vfn = l2norm(vf)
        vs = vfn @ vfn.T / TEMPERATURE; np.fill_diagonal(vs, -np.inf)
        ns = nfn @ nfn.T / TEMPERATURE; np.fill_diagonal(ns, -np.inf)
        cs = vfn @ nfn.T / TEMPERATURE
        contrast = 0.0
        if vfn.shape[0] > 1:
            contrast += np.maximum(cs.max(axis=1) - vs.max(axis=1) + MARGIN_CONTRAST, 0).mean()
        if nfn.shape[0] > 1:
            contrast += np.maximum(cs.max(axis=0) - ns.max(axis=1) + MARGIN_CONTRAST, 0).mean()
        contrast += np.maximum(cs + MARGIN_CONTRAST, 0).mean()
        total = base + LAMBDA_CONTRAST * contrast

    nl = logits[:, 0]; vl = logits[:, 2]
    bl = 0.0
    if nm.any():
        bl += np.maximum(vl[nm] - nl[nm] + MARGIN_BOUNDARY, 0).mean()
    if vm.any():
        bl += np.maximum(nl[vm] - vl[vm] + MARGIN_BOUNDARY, 0).mean()
    total = total + LAMBDA_BOUNDARY * bl

    if nm.any() and vm.any():
        nfn = l2norm(nf); vfn = l2norm(vf)
        nc = nfn.mean(axis=0, keepdims=True); vc = vfn.mean(axis=0, keepdims=True)
        d = lambda x, c: np.sqrt(((x - c + PAIRWISE_EPS) ** 2).sum(axis=1))
        tl = np.maximum(d(nfn, nc) - d(nfn, vc) + MARGIN_TRIPLET, 0).mean()
        tl += np.maximum(d(vfn, vc) - d(vfn, nc) + MARGIN_TRIPLET, 0).mean()
        total = total + LAMBDA_TRIPLET * tl
    return float(total)


if __name__ == "__main__":
    key = jax.random.PRNGKey(0)
    k1, k2 = jax.random.split(key)
    # B deliberately NOT a multiple of the row tile so padding + multi-tile
    # accumulation paths are exercised (row_tile=8 -> 2 tiles, 2 padded rows).
    B, C, H = 14, 4, 32
    logits = jax.random.normal(k1, (B, C), dtype=jnp.float32)
    features = jax.random.normal(k2, (B, H), dtype=jnp.float32)
    labels = jnp.array([0, 2, 1, 0, 2, 0, 2, 1, 0, 1, 2, 0, 2, 1], dtype=jnp.int32)

    loss_fn = jax.jit(functools.partial(combined_violation_normal_loss, row_tile=8))
    total, loss_dict = loss_fn(logits, features, labels)
    total = jax.block_until_ready(total)

    ref = reference_loss_numpy(np.asarray(logits), np.asarray(features),
                               np.asarray(labels))
    assert np.isfinite(float(total)), "kernel produced non-finite loss"
    assert abs(float(total) - ref) < 5e-2 * max(1.0, abs(ref)), (float(total), ref)
    print("KERNEL_OK")
</pallas_src>

<mosaic_0001>
module attributes {stable_mosaic.version = 11 : i64} {
  func.func @combined_loss_kernel(%arg0: memref<16x4xf32, #tpu.memory_space<vmem>>, %arg1: memref<16x32xf32, #tpu.memory_space<vmem>>, %arg2: memref<16x1xi32, #tpu.memory_space<vmem>>, %arg3: memref<1x16xi32, #tpu.memory_space<vmem>>, %arg4: memref<1x8xf32, #tpu.memory_space<vmem>>, %arg5: memref<16x32xf32, #tpu.memory_space<vmem>>) attributes {dimension_semantics = [], scalar_prefetch = 0 : i64, scratch_operands = 1 : i64, tpu.core_type = #tpu.core_type<tc>} {
    %c0 = arith.constant 0 : index
    %c0_0 = arith.constant 0 : index
    %0 = vector.load %arg0[%c0, %c0_0] : memref<16x4xf32, #tpu.memory_space<vmem>>, vector<16x4xf32>
    %c0_1 = arith.constant 0 : index
    %c0_2 = arith.constant 0 : index
    %1 = vector.load %arg2[%c0_1, %c0_2] : memref<16x1xi32, #tpu.memory_space<vmem>>, vector<16x1xi32>
    %c0_i32 = arith.constant 0 : i32
    %2 = vector.broadcast %c0_i32 : i32 to vector<16x1xi32>
    %3 = arith.cmpi eq, %1, %2 : vector<16x1xi32>
    %4 = arith.extui %3 : vector<16x1xi1> to vector<16x1xi32>
    %5 = arith.sitofp %4 : vector<16x1xi32> to vector<16x1xf32>
    %c2_i32 = arith.constant 2 : i32
    %6 = vector.broadcast %c2_i32 : i32 to vector<16x1xi32>
    %7 = arith.cmpi eq, %1, %6 : vector<16x1xi32>
    %8 = arith.extui %7 : vector<16x1xi1> to vector<16x1xi32>
    %9 = arith.sitofp %8 : vector<16x1xi32> to vector<16x1xf32>
    %cst = arith.constant dense<0.000000e+00> : vector<1xf32>
    %10 = vector.multi_reduction <add>, %5, %cst [0] : vector<16x1xf32> to vector<1xf32>
    %11 = vector.shape_cast %10 : vector<1xf32> to vector<1x1xf32>
    %cst_3 = arith.constant dense<0.000000e+00> : vector<1xf32>
    %12 = vector.multi_reduction <add>, %9, %cst_3 [0] : vector<16x1xf32> to vector<1xf32>
    %13 = vector.shape_cast %12 : vector<1xf32> to vector<1x1xf32>
    %cst_4 = arith.constant 1.000000e+00 : f32
    %14 = vector.broadcast %cst_4 : f32 to vector<1x1xf32>
    %15 = arith.maximumf %11, %14 : vector<1x1xf32>
    %cst_5 = arith.constant 1.000000e+00 : f32
    %16 = vector.broadcast %cst_5 : f32 to vector<1x1xf32>
    %17 = arith.divf %16, %15 : vector<1x1xf32>
    %cst_6 = arith.constant 1.000000e+00 : f32
    %18 = vector.broadcast %cst_6 : f32 to vector<1x1xf32>
    %19 = arith.maximumf %13, %18 : vector<1x1xf32>
    %cst_7 = arith.constant 1.000000e+00 : f32
    %20 = vector.broadcast %cst_7 : f32 to vector<1x1xf32>
    %21 = arith.divf %20, %19 : vector<1x1xf32>
    %cst_8 = arith.constant 0.000000e+00 : f32
    %22 = vector.broadcast %cst_8 : f32 to vector<1x1xf32>
    %23 = arith.cmpf ogt, %11, %22 : vector<1x1xf32>
    %24 = arith.extui %23 : vector<1x1xi1> to vector<1x1xi32>
    %25 = arith.sitofp %24 : vector<1x1xi32> to vector<1x1xf32>
    %cst_9 = arith.constant 0.000000e+00 : f32
    %26 = vector.broadcast %cst_9 : f32 to vector<1x1xf32>
    %27 = arith.cmpf ogt, %13, %26 : vector<1x1xf32>
    %28 = arith.extui %27 : vector<1x1xi1> to vector<1x1xi32>
    %29 = arith.sitofp %28 : vector<1x1xi32> to vector<1x1xf32>
    %30 = arith.mulf %25, %29 : vector<1x1xf32>
    %cst_10 = arith.constant 1.000000e+00 : f32
    %31 = vector.broadcast %cst_10 : f32 to vector<1x1xf32>
    %32 = arith.cmpf ogt, %11, %31 : vector<1x1xf32>
    %33 = arith.extui %32 : vector<1x1xi1> to vector<1x1xi32>
    %34 = arith.sitofp %33 : vector<1x1xi32> to vector<1x1xf32>
    %cst_11 = arith.constant 1.000000e+00 : f32
    %35 = vector.broadcast %cst_11 : f32 to vector<1x1xf32>
    %36 = arith.cmpf ogt, %13, %35 : vector<1x1xf32>
    %37 = arith.extui %36 : vector<1x1xi1> to vector<1x1xi32>
    %38 = arith.sitofp %37 : vector<1x1xi32> to vector<1x1xf32>
    %39 = tpu.iota {dimensions = array<i32: 0>} : vector<16x1xi32>
    %c14_i32 = arith.constant 14 : i32
    %40 = vector.broadcast %c14_i32 : i32 to vector<16x1xi32>
    %41 = arith.cmpi slt, %39, %40 : vector<16x1xi32>
    %42 = arith.extui %41 : vector<16x1xi1> to vector<16x1xi32>
    %43 = arith.sitofp %42 : vector<16x1xi32> to vector<16x1xf32>
    %cst_12 = arith.constant dense<0xFF800000> : vector<16xf32>
    %44 = vector.multi_reduction <maximumf>, %0, %cst_12 [1] : vector<16x4xf32> to vector<16xf32>
    %45 = vector.shape_cast %44 : vector<16xf32> to vector<16x1xf32>
    %46 = vector.broadcast %45 : vector<16x1xf32> to vector<16x4xf32>
    %47 = arith.subf %0, %46 : vector<16x4xf32>
    %48 = math.exp %47 : vector<16x4xf32>
    %cst_13 = arith.constant dense<0.000000e+00> : vector<16xf32>
    %49 = vector.multi_reduction <add>, %48, %cst_13 [1] : vector<16x4xf32> to vector<16xf32>
    %50 = vector.shape_cast %49 : vector<16xf32> to vector<16x1xf32>
    %51 = math.log %50 : vector<16x1xf32>
    %52 = arith.addf %45, %51 : vector<16x1xf32>
    %53 = tpu.iota {dimensions = array<i32: 1>} : vector<16x4xi32>
    %54 = vector.broadcast %1 : vector<16x1xi32> to vector<16x4xi32>
    %55 = arith.cmpi eq, %53, %54 : vector<16x4xi32>
    %56 = arith.extui %55 : vector<16x4xi1> to vector<16x4xi32>
    %57 = arith.sitofp %56 : vector<16x4xi32> to vector<16x4xf32>
    %58 = arith.mulf %0, %57 : vector<16x4xf32>
    %cst_14 = arith.constant dense<0.000000e+00> : vector<16xf32>
    %59 = vector.multi_reduction <add>, %58, %cst_14 [1] : vector<16x4xf32> to vector<16xf32>
    %60 = vector.shape_cast %59 : vector<16xf32> to vector<16x1xf32>
    %61 = arith.subf %52, %60 : vector<16x1xf32>
    %cst_15 = arith.constant 0.000000e+00 : f32
    %62 = vector.broadcast %cst_15 : f32 to vector<16x1xf32>
    %63 = arith.subf %62, %61 : vector<16x1xf32>
    %64 = math.exp %63 : vector<16x1xf32>
    %cst_16 = arith.constant 1.000000e+00 : f32
    %65 = vector.broadcast %cst_16 : f32 to vector<16x1xf32>
    %66 = arith.subf %65, %64 : vector<16x1xf32>
    %67 = arith.mulf %66, %66 : vector<16x1xf32>
    %68 = arith.mulf %67, %66 : vector<16x1xf32>
    %c2_i32_17 = arith.constant 2 : i32
    %69 = vector.broadcast %c2_i32_17 : i32 to vector<16x1xi32>
    %70 = arith.cmpi eq, %1, %69 : vector<16x1xi32>
    %cst_18 = arith.constant 3.000000e+00 : f32
    %cst_19 = arith.constant 1.000000e+00 : f32
    %71 = vector.broadcast %cst_18 : f32 to vector<16x1xf32>
    %72 = vector.broadcast %cst_19 : f32 to vector<16x1xf32>
    %73 = arith.select %70, %71, %72 : vector<16x1xi1>, vector<16x1xf32>
    %74 = arith.select %70, %68, %67 : vector<16x1xi1>, vector<16x1xf32>
    %75 = arith.mulf %73, %74 : vector<16x1xf32>
    %76 = arith.mulf %75, %61 : vector<16x1xf32>
    %77 = arith.mulf %76, %43 : vector<16x1xf32>
    %cst_20 = arith.constant dense<0.000000e+00> : vector<1xf32>
    %78 = vector.multi_reduction <add>, %77, %cst_20 [0] : vector<16x1xf32> to vector<1xf32>
    %79 = vector.shape_cast %78 : vector<1xf32> to vector<1x1xf32>
    %cst_21 = arith.constant 0.0714285746 : f32
    %80 = vector.broadcast %cst_21 : f32 to vector<1x1xf32>
    %81 = arith.mulf %79, %80 : vector<1x1xf32>
    %c0_22 = arith.constant 0 : index
    %c0_23 = arith.constant 0 : index
    %82 = vector.load %arg1[%c0_22, %c0_23] : memref<16x32xf32, #tpu.memory_space<vmem>>, vector<16x32xf32>
    %83 = arith.mulf %82, %82 : vector<16x32xf32>
    %cst_24 = arith.constant dense<0.000000e+00> : vector<16xf32>
    %84 = vector.multi_reduction <add>, %83, %cst_24 [1] : vector<16x32xf32> to vector<16xf32>
    %85 = vector.shape_cast %84 : vector<16xf32> to vector<16x1xf32>
    %cst_25 = arith.constant 1.000000e-24 : f32
    %86 = vector.broadcast %cst_25 : f32 to vector<16x1xf32>
    %87 = arith.maximumf %85, %86 : vector<16x1xf32>
    %88 = math.rsqrt %87 : vector<16x1xf32>
    %89 = vector.broadcast %88 : vector<16x1xf32> to vector<16x32xf32>
    %90 = arith.mulf %82, %89 : vector<16x32xf32>
    %c0_26 = arith.constant 0 : index
    %c0_27 = arith.constant 0 : index
    %91 = vector.load %arg5[%c0_26, %c0_27] : memref<16x32xf32, #tpu.memory_space<vmem>>, vector<16x32xf32>
    tpu.vector_store %arg5[%c0_26, %c0_27], %90 {strides = array<i32>} : memref<16x32xf32, #tpu.memory_space<vmem>>, vector<16x32xf32>,
    %92 = vector.extract_strided_slice %0 {offsets = [0, 0], sizes = [16, 1], strides = [1, 1]} : vector<16x4xf32> to vector<16x1xf32>
    %93 = vector.extract_strided_slice %0 {offsets = [0, 2], sizes = [16, 1], strides = [1, 1]} : vector<16x4xf32> to vector<16x1xf32>
    %94 = arith.subf %93, %92 : vector<16x1xf32>
    %cst_28 = arith.constant 2.000000e+00 : f32
    %95 = vector.broadcast %cst_28 : f32 to vector<16x1xf32>
    %96 = arith.addf %94, %95 : vector<16x1xf32>
    %cst_29 = arith.constant 0.000000e+00 : f32
    %97 = vector.broadcast %cst_29 : f32 to vector<16x1xf32>
    %98 = arith.maximumf %96, %97 : vector<16x1xf32>
    %99 = arith.mulf %98, %5 : vector<16x1xf32>
    %cst_30 = arith.constant dense<0.000000e+00> : vector<1xf32>
    %100 = vector.multi_reduction <add>, %99, %cst_30 [0] : vector<16x1xf32> to vector<1xf32>
    %101 = vector.shape_cast %100 : vector<1xf32> to vector<1x1xf32>
    %102 = arith.mulf %101, %17 : vector<1x1xf32>
    %103 = arith.subf %92, %93 : vector<16x1xf32>
    %cst_31 = arith.constant 2.000000e+00 : f32
    %104 = vector.broadcast %cst_31 : f32 to vector<16x1xf32>
    %105 = arith.addf %103, %104 : vector<16x1xf32>
    %cst_32 = arith.constant 0.000000e+00 : f32
    %106 = vector.broadcast %cst_32 : f32 to vector<16x1xf32>
    %107 = arith.maximumf %105, %106 : vector<16x1xf32>
    %108 = arith.mulf %107, %9 : vector<16x1xf32>
    %cst_33 = arith.constant dense<0.000000e+00> : vector<1xf32>
    %109 = vector.multi_reduction <add>, %108, %cst_33 [0] : vector<16x1xf32> to vector<1xf32>
    %110 = vector.shape_cast %109 : vector<1xf32> to vector<1x1xf32>
    %111 = arith.mulf %110, %21 : vector<1x1xf32>
    %112 = arith.mulf %25, %102 : vector<1x1xf32>
    %113 = arith.mulf %29, %111 : vector<1x1xf32>
    %114 = arith.addf %112, %113 : vector<1x1xf32>
    %115 = vector.broadcast %5 : vector<16x1xf32> to vector<16x32xf32>
    %116 = arith.mulf %90, %115 : vector<16x32xf32>
    %cst_34 = arith.constant dense<0.000000e+00> : vector<32xf32>
    %117 = vector.multi_reduction <add>, %116, %cst_34 [0] : vector<16x32xf32> to vector<32xf32>
    %118 = vector.shape_cast %117 : vector<32xf32> to vector<1x32xf32>
    %119 = vector.broadcast %17 : vector<1x1xf32> to vector<1x32xf32>
    %120 = arith.mulf %118, %119 : vector<1x32xf32>
    %121 = vector.broadcast %9 : vector<16x1xf32> to vector<16x32xf32>
    %122 = arith.mulf %90, %121 : vector<16x32xf32>
    %cst_35 = arith.constant dense<0.000000e+00> : vector<32xf32>
    %123 = vector.multi_reduction <add>, %122, %cst_35 [0] : vector<16x32xf32> to vector<32xf32>
    %124 = vector.shape_cast %123 : vector<32xf32> to vector<1x32xf32>
    %125 = vector.broadcast %21 : vector<1x1xf32> to vector<1x32xf32>
    %126 = arith.mulf %124, %125 : vector<1x32xf32>
    %127 = vector.broadcast %120 : vector<1x32xf32> to vector<16x32xf32>
    %128 = arith.subf %90, %127 : vector<16x32xf32>
    %cst_36 = arith.constant 9.99999997E-7 : f32
    %129 = vector.broadcast %cst_36 : f32 to vector<16x32xf32>
    %130 = arith.addf %128, %129 : vector<16x32xf32>
    %131 = vector.broadcast %126 : vector<1x32xf32> to vector<16x32xf32>
    %132 = arith.subf %90, %131 : vector<16x32xf32>
    %cst_37 = arith.constant 9.99999997E-7 : f32
    %133 = vector.broadcast %cst_37 : f32 to vector<16x32xf32>
    %134 = arith.addf %132, %133 : vector<16x32xf32>
    %135 = arith.mulf %130, %130 : vector<16x32xf32>
    %cst_38 = arith.constant dense<0.000000e+00> : vector<16xf32>
    %136 = vector.multi_reduction <add>, %135, %cst_38 [1] : vector<16x32xf32> to vector<16xf32>
    %137 = vector.shape_cast %136 : vector<16xf32> to vector<16x1xf32>
    %138 = math.sqrt %137 : vector<16x1xf32>
    %139 = arith.mulf %134, %134 : vector<16x32xf32>
    %cst_39 = arith.constant dense<0.000000e+00> : vector<16xf32>
    %140 = vector.multi_reduction <add>, %139, %cst_39 [1] : vector<16x32xf32> to vector<16xf32>
    %141 = vector.shape_cast %140 : vector<16xf32> to vector<16x1xf32>
    %142 = math.sqrt %141 : vector<16x1xf32>
    %143 = arith.subf %138, %142 : vector<16x1xf32>
    %cst_40 = arith.constant 1.000000e+00 : f32
    %144 = vector.broadcast %cst_40 : f32 to vector<16x1xf32>
    %145 = arith.addf %143, %144 : vector<16x1xf32>
    %cst_41 = arith.constant 0.000000e+00 : f32
    %146 = vector.broadcast %cst_41 : f32 to vector<16x1xf32>
    %147 = arith.maximumf %145, %146 : vector<16x1xf32>
    %148 = arith.mulf %147, %5 : vector<16x1xf32>
    %cst_42 = arith.constant dense<0.000000e+00> : vector<1xf32>
    %149 = vector.multi_reduction <add>, %148, %cst_42 [0] : vector<16x1xf32> to vector<1xf32>
    %150 = vector.shape_cast %149 : vector<1xf32> to vector<1x1xf32>
    %151 = arith.mulf %150, %17 : vector<1x1xf32>
    %152 = arith.subf %142, %138 : vector<16x1xf32>
    %cst_43 = arith.constant 1.000000e+00 : f32
    %153 = vector.broadcast %cst_43 : f32 to vector<16x1xf32>
    %154 = arith.addf %152, %153 : vector<16x1xf32>
    %cst_44 = arith.constant 0.000000e+00 : f32
    %155 = vector.broadcast %cst_44 : f32 to vector<16x1xf32>
    %156 = arith.maximumf %154, %155 : vector<16x1xf32>
    %157 = arith.mulf %156, %9 : vector<16x1xf32>
    %cst_45 = arith.constant dense<0.000000e+00> : vector<1xf32>
    %158 = vector.multi_reduction <add>, %157, %cst_45 [0] : vector<16x1xf32> to vector<1xf32>
    %159 = vector.shape_cast %158 : vector<1xf32> to vector<1x1xf32>
    %160 = arith.mulf %159, %21 : vector<1x1xf32>
    %161 = arith.addf %151, %160 : vector<1x1xf32>
    %cst_46 = arith.constant 0.000000e+00 : f32
    %162 = vector.broadcast %cst_46 : f32 to vector<1x1xf32>
    %c0_i32_47 = arith.constant 0 : i32
    %c2_i32_48 = arith.constant 2 : i32
    %163 = arith.addi %c0_i32_47, %c2_i32_48 : i32
    %c1_i32 = arith.constant 1 : i32
    %164:3 = scf.for %arg6 = %c0_i32_47 to %163 step %c1_i32 iter_args(%arg7 = %162, %arg8 = %162, %arg9 = %162) -> (vector<1x1xf32>, vector<1x1xf32>, vector<1x1xf32>)  : i32 {
      %c8_i32 = arith.constant 8 : i32
      %238 = arith.muli %arg6, %c8_i32 : i32
      %239 = tpu.assume_multiple %238, 8 : i32
      %240 = arith.index_cast %239 : i32 to index
      %c0_68 = arith.constant 0 : index
      %241 = vector.load %arg5[%240, %c0_68] : memref<16x32xf32, #tpu.memory_space<vmem>>, vector<8x32xf32>
      %cst_69 = arith.constant 14.2857141 : f32
      %242 = vector.broadcast %cst_69 : f32 to vector<8x32xf32>
      %243 = arith.mulf %241, %242 : vector<8x32xf32>
      %c0_70 = arith.constant 0 : index
      %c0_71 = arith.constant 0 : index
      %244 = vector.load %arg5[%c0_70, %c0_71] : memref<16x32xf32, #tpu.memory_space<vmem>>, vector<16x32xf32>
      %cst_72 = arith.constant dense<0.000000e+00> : vector<8x16xf32>
      %245 = tpu.matmul %243, %244, %cst_72 {dimension_numbers = #tpu.dot_dimension_numbers<[1], [1], [0], [0], [0, 0, 1, 0], [], []>} : vector<8x32xf32>, vector<16x32xf32>, vector<8x16xf32> -> vector<8x16xf32>
      %c0_73 = arith.constant 0 : index
      %c0_74 = arith.constant 0 : index
      %246 = vector.load %arg3[%c0_73, %c0_74] : memref<1x16xi32, #tpu.memory_space<vmem>>, vector<1x16xi32>
      %c2_i32_75 = arith.constant 2 : i32
      %247 = vector.broadcast %c2_i32_75 : i32 to vector<1x16xi32>
      %248 = arith.cmpi eq, %246, %247 : vector<1x16xi32>
      %c0_i32_76 = arith.constant 0 : i32
      %249 = vector.broadcast %c0_i32_76 : i32 to vector<1x16xi32>
      %250 = arith.cmpi eq, %246, %249 : vector<1x16xi32>
      %251 = tpu.iota {dimensions = array<i32: 0>} : vector<8x16xi32>
      %252 = vector.broadcast %239 : i32 to vector<8x16xi32>
      %253 = arith.addi %252, %251 : vector<8x16xi32>
      %254 = tpu.iota {dimensions = array<i32: 1>} : vector<8x16xi32>
      %255 = arith.cmpi eq, %253, %254 : vector<8x16xi32>
      %cst_77 = arith.constant -1.000000e+30 : f32
      %256 = vector.broadcast %cst_77 : f32 to vector<8x16xf32>
      %257 = arith.select %255, %256, %245 : vector<8x16xi1>, vector<8x16xf32>
      %cst_78 = arith.constant -1.000000e+30 : f32
      %258 = vector.shape_cast %248 : vector<1x16xi1> to vector<1x16xi1>
      %259 = vector.broadcast %258 : vector<1x16xi1> to vector<8x16xi1>
      %260 = vector.broadcast %cst_78 : f32 to vector<8x16xf32>
      %261 = arith.select %259, %257, %260 : vector<8x16xi1>, vector<8x16xf32>
      %cst_79 = arith.constant dense<0xFF800000> : vector<8xf32>
      %262 = vector.multi_reduction <maximumf>, %261, %cst_79 [1] : vector<8x16xf32> to vector<8xf32>
      %263 = vector.shape_cast %262 : vector<8xf32> to vector<8x1xf32>
      %cst_80 = arith.constant -1.000000e+30 : f32
      %264 = vector.shape_cast %250 : vector<1x16xi1> to vector<1x16xi1>
      %265 = vector.broadcast %264 : vector<1x16xi1> to vector<8x16xi1>
      %266 = vector.broadcast %cst_80 : f32 to vector<8x16xf32>
      %267 = arith.select %265, %245, %266 : vector<8x16xi1>, vector<8x16xf32>
      %cst_81 = arith.constant dense<0xFF800000> : vector<8xf32>
      %268 = vector.multi_reduction <maximumf>, %267, %cst_81 [1] : vector<8x16xf32> to vector<8xf32>
      %269 = vector.shape_cast %268 : vector<8xf32> to vector<8x1xf32>
      %cst_82 = arith.constant -1.000000e+30 : f32
      %270 = vector.shape_cast %250 : vector<1x16xi1> to vector<1x16xi1>
      %271 = vector.broadcast %270 : vector<1x16xi1> to vector<8x16xi1>
      %272 = vector.broadcast %cst_82 : f32 to vector<8x16xf32>
      %273 = arith.select %271, %257, %272 : vector<8x16xi1>, vector<8x16xf32>
      %cst_83 = arith.constant dense<0xFF800000> : vector<8xf32>
      %274 = vector.multi_reduction <maximumf>, %273, %cst_83 [1] : vector<8x16xf32> to vector<8xf32>
      %275 = vector.shape_cast %274 : vector<8xf32> to vector<8x1xf32>
      %cst_84 = arith.constant -1.000000e+30 : f32
      %276 = vector.shape_cast %248 : vector<1x16xi1> to vector<1x16xi1>
      %277 = vector.broadcast %276 : vector<1x16xi1> to vector<8x16xi1>
      %278 = vector.broadcast %cst_84 : f32 to vector<8x16xf32>
      %279 = arith.select %277, %245, %278 : vector<8x16xi1>, vector<8x16xf32>
      %cst_85 = arith.constant dense<0xFF800000> : vector<8xf32>
      %280 = vector.multi_reduction <maximumf>, %279, %cst_85 [1] : vector<8x16xf32> to vector<8xf32>
      %281 = vector.shape_cast %280 : vector<8xf32> to vector<8x1xf32>
      %cst_86 = arith.constant -5.000000e+29 : f32
      %282 = vector.broadcast %cst_86 : f32 to vector<8x1xf32>
      %283 = arith.cmpf ogt, %263, %282 : vector<8x1xf32>
      %284 = arith.subf %269, %263 : vector<8x1xf32>
      %cst_87 = arith.constant 1.000000e+00 : f32
      %285 = vector.broadcast %cst_87 : f32 to vector<8x1xf32>
      %286 = arith.addf %284, %285 : vector<8x1xf32>
      %cst_88 = arith.constant 0.000000e+00 : f32
      %287 = vector.broadcast %cst_88 : f32 to vector<8x1xf32>
      %288 = arith.maximumf %286, %287 : vector<8x1xf32>
      %cst_89 = arith.constant 0.000000e+00 : f32
      %289 = vector.broadcast %cst_89 : f32 to vector<8x1xf32>
      %290 = arith.select %283, %288, %289 : vector<8x1xi1>, vector<8x1xf32>
      %cst_90 = arith.constant -5.000000e+29 : f32
      %291 = vector.broadcast %cst_90 : f32 to vector<8x1xf32>
      %292 = arith.cmpf ogt, %275, %291 : vector<8x1xf32>
      %293 = arith.subf %281, %275 : vector<8x1xf32>
      %cst_91 = arith.constant 1.000000e+00 : f32
      %294 = vector.broadcast %cst_91 : f32 to vector<8x1xf32>
      %295 = arith.addf %293, %294 : vector<8x1xf32>
      %cst_92 = arith.constant 0.000000e+00 : f32
      %296 = vector.broadcast %cst_92 : f32 to vector<8x1xf32>
      %297 = arith.maximumf %295, %296 : vector<8x1xf32>
      %cst_93 = arith.constant 0.000000e+00 : f32
      %298 = vector.broadcast %cst_93 : f32 to vector<8x1xf32>
      %299 = arith.select %292, %297, %298 : vector<8x1xi1>, vector<8x1xf32>
      %300 = arith.index_cast %239 : i32 to index
      %c0_94 = arith.constant 0 : index
      %301 = vector.load %arg2[%300, %c0_94] : memref<16x1xi32, #tpu.memory_space<vmem>>, vector<8x1xi32>
      %c2_i32_95 = arith.constant 2 : i32
      %302 = vector.broadcast %c2_i32_95 : i32 to vector<8x1xi32>
      %303 = arith.cmpi eq, %301, %302 : vector<8x1xi32>
      %304 = arith.extui %303 : vector<8x1xi1> to vector<8x1xi32>
      %305 = arith.sitofp %304 : vector<8x1xi32> to vector<8x1xf32>
      %c0_i32_96 = arith.constant 0 : i32
      %306 = vector.broadcast %c0_i32_96 : i32 to vector<8x1xi32>
      %307 = arith.cmpi eq, %301, %306 : vector<8x1xi32>
      %308 = arith.extui %307 : vector<8x1xi1> to vector<8x1xi32>
      %309 = arith.sitofp %308 : vector<8x1xi32> to vector<8x1xf32>
      %cst_97 = arith.constant 1.000000e+00 : f32
      %310 = vector.broadcast %cst_97 : f32 to vector<8x16xf32>
      %311 = arith.addf %245, %310 : vector<8x16xf32>
      %cst_98 = arith.constant 0.000000e+00 : f32
      %312 = vector.broadcast %cst_98 : f32 to vector<8x16xf32>
      %313 = arith.maximumf %311, %312 : vector<8x16xf32>
      %cst_99 = arith.constant 0.000000e+00 : f32
      %314 = vector.shape_cast %250 : vector<1x16xi1> to vector<1x16xi1>
      %315 = vector.broadcast %314 : vector<1x16xi1> to vector<8x16xi1>
      %316 = vector.broadcast %cst_99 : f32 to vector<8x16xf32>
      %317 = arith.select %315, %313, %316 : vector<8x16xi1>, vector<8x16xf32>
      %cst_100 = arith.constant dense<0.000000e+00> : vector<8xf32>
      %318 = vector.multi_reduction <add>, %317, %cst_100 [1] : vector<8x16xf32> to vector<8xf32>
      %319 = vector.shape_cast %318 : vector<8xf32> to vector<8x1xf32>
      %320 = arith.mulf %290, %305 : vector<8x1xf32>
      %cst_101 = arith.constant dense<0.000000e+00> : vector<1xf32>
      %321 = vector.multi_reduction <add>, %320, %cst_101 [0] : vector<8x1xf32> to vector<1xf32>
      %322 = vector.shape_cast %321 : vector<1xf32> to vector<1x1xf32>
      %323 = arith.addf %arg7, %322 : vector<1x1xf32>
      %324 = arith.mulf %299, %309 : vector<8x1xf32>
      %cst_102 = arith.constant dense<0.000000e+00> : vector<1xf32>
      %325 = vector.multi_reduction <add>, %324, %cst_102 [0] : vector<8x1xf32> to vector<1xf32>
      %326 = vector.shape_cast %325 : vector<1xf32> to vector<1x1xf32>
      %327 = arith.addf %arg8, %326 : vector<1x1xf32>
      %328 = arith.mulf %319, %305 : vector<8x1xf32>
      %cst_103 = arith.constant dense<0.000000e+00> : vector<1xf32>
      %329 = vector.multi_reduction <add>, %328, %cst_103 [0] : vector<8x1xf32> to vector<1xf32>
      %330 = vector.shape_cast %329 : vector<1xf32> to vector<1x1xf32>
      %331 = arith.addf %arg9, %330 : vector<1x1xf32>
      scf.yield %323, %327, %331 : vector<1x1xf32>, vector<1x1xf32>, vector<1x1xf32>
    }
    %c2_i32_49 = arith.constant 2 : i32
    %165 = arith.mulf %13, %11 : vector<1x1xf32>
    %cst_50 = arith.constant 1.000000e+00 : f32
    %166 = vector.broadcast %cst_50 : f32 to vector<1x1xf32>
    %167 = arith.maximumf %165, %166 : vector<1x1xf32>
    %cst_51 = arith.constant 1.000000e+00 : f32
    %168 = vector.broadcast %cst_51 : f32 to vector<1x1xf32>
    %169 = arith.divf %168, %167 : vector<1x1xf32>
    %170 = arith.mulf %164#2, %169 : vector<1x1xf32>
    %171 = arith.mulf %38, %164#0 : vector<1x1xf32>
    %172 = arith.mulf %171, %21 : vector<1x1xf32>
    %173 = arith.mulf %34, %164#1 : vector<1x1xf32>
    %174 = arith.mulf %173, %17 : vector<1x1xf32>
    %175 = arith.addf %172, %174 : vector<1x1xf32>
    %176 = arith.addf %175, %170 : vector<1x1xf32>
    %cst_52 = arith.constant 1.000000e+00 : f32
    %177 = vector.broadcast %cst_52 : f32 to vector<1x1xf32>
    %178 = arith.mulf %177, %81 : vector<1x1xf32>
    %cst_53 = arith.constant 0.000000e+00 : f32
    %179 = vector.broadcast %cst_53 : f32 to vector<1x1xf32>
    %180 = arith.cmpf ogt, %30, %179 : vector<1x1xf32>
    %cst_54 = arith.constant 5.000000e-01 : f32
    %181 = vector.broadcast %cst_54 : f32 to vector<1x1xf32>
    %182 = arith.mulf %181, %176 : vector<1x1xf32>
    %183 = arith.addf %81, %182 : vector<1x1xf32>
    %184 = arith.select %180, %183, %178 : vector<1x1xi1>, vector<1x1xf32>
    %cst_55 = arith.constant 3.000000e-01 : f32
    %185 = vector.broadcast %cst_55 : f32 to vector<1x1xf32>
    %186 = arith.mulf %185, %114 : vector<1x1xf32>
    %187 = arith.addf %184, %186 : vector<1x1xf32>
    %cst_56 = arith.constant 2.000000e-01 : f32
    %188 = vector.broadcast %cst_56 : f32 to vector<1x1xf32>
    %189 = arith.mulf %30, %188 : vector<1x1xf32>
    %190 = arith.mulf %189, %161 : vector<1x1xf32>
    %191 = arith.addf %187, %190 : vector<1x1xf32>
    %192 = tpu.iota {dimensions = array<i32: 1>} : vector<1x8xi32>
    %c0_i32_57 = arith.constant 0 : i32
    %193 = vector.broadcast %c0_i32_57 : i32 to vector<1x8xi32>
    %194 = arith.cmpi eq, %192, %193 : vector<1x8xi32>
    %cst_58 = arith.constant 0.000000e+00 : f32
    %195 = vector.shape_cast %191 : vector<1x1xf32> to vector<1x1xf32>
    %196 = vector.broadcast %195 : vector<1x1xf32> to vector<1x8xf32>
    %197 = vector.broadcast %cst_58 : f32 to vector<1x8xf32>
    %198 = arith.select %194, %196, %197 : vector<1x8xi1>, vector<1x8xf32>
    %c1_i32_59 = arith.constant 1 : i32
    %199 = vector.broadcast %c1_i32_59 : i32 to vector<1x8xi32>
    %200 = arith.cmpi eq, %192, %199 : vector<1x8xi32>
    %cst_60 = arith.constant 0.000000e+00 : f32
    %201 = vector.shape_cast %81 : vector<1x1xf32> to vector<1x1xf32>
    %202 = vector.broadcast %201 : vector<1x1xf32> to vector<1x8xf32>
    %203 = vector.broadcast %cst_60 : f32 to vector<1x8xf32>
    %204 = arith.select %200, %202, %203 : vector<1x8xi1>, vector<1x8xf32>
    %205 = arith.addf %198, %204 : vector<1x8xf32>
    %c2_i32_61 = arith.constant 2 : i32
    %206 = vector.broadcast %c2_i32_61 : i32 to vector<1x8xi32>
    %207 = arith.cmpi eq, %192, %206 : vector<1x8xi32>
    %208 = arith.mulf %30, %176 : vector<1x1xf32>
    %cst_62 = arith.constant 0.000000e+00 : f32
    %209 = vector.shape_cast %208 : vector<1x1xf32> to vector<1x1xf32>
    %210 = vector.broadcast %209 : vector<1x1xf32> to vector<1x8xf32>
    %211 = vector.broadcast %cst_62 : f32 to vector<1x8xf32>
    %212 = arith.select %207, %210, %211 : vector<1x8xi1>, vector<1x8xf32>
    %213 = arith.addf %205, %212 : vector<1x8xf32>
    %c3_i32 = arith.constant 3 : i32
    %214 = vector.broadcast %c3_i32 : i32 to vector<1x8xi32>
    %215 = arith.cmpi eq, %192, %214 : vector<1x8xi32>
    %cst_63 = arith.constant 0.000000e+00 : f32
    %216 = vector.shape_cast %114 : vector<1x1xf32> to vector<1x1xf32>
    %217 = vector.broadcast %216 : vector<1x1xf32> to vector<1x8xf32>
    %218 = vector.broadcast %cst_63 : f32 to vector<1x8xf32>
    %219 = arith.select %215, %217, %218 : vector<1x8xi1>, vector<1x8xf32>
    %220 = arith.addf %213, %219 : vector<1x8xf32>
    %c4_i32 = arith.constant 4 : i32
    %221 = vector.broadcast %c4_i32 : i32 to vector<1x8xi32>
    %222 = arith.cmpi eq, %192, %221 : vector<1x8xi32>
    %223 = arith.mulf %30, %161 : vector<1x1xf32>
    %cst_64 = arith.constant 0.000000e+00 : f32
    %224 = vector.shape_cast %223 : vector<1x1xf32> to vector<1x1xf32>
    %225 = vector.broadcast %224 : vector<1x1xf32> to vector<1x8xf32>
    %226 = vector.broadcast %cst_64 : f32 to vector<1x8xf32>
    %227 = arith.select %222, %225, %226 : vector<1x8xi1>, vector<1x8xf32>
    %228 = arith.addf %220, %227 : vector<1x8xf32>
    %c5_i32 = arith.constant 5 : i32
    %229 = vector.broadcast %c5_i32 : i32 to vector<1x8xi32>
    %230 = arith.cmpi eq, %192, %229 : vector<1x8xi32>
    %231 = arith.mulf %30, %170 : vector<1x1xf32>
    %cst_65 = arith.constant 0.000000e+00 : f32
    %232 = vector.shape_cast %231 : vector<1x1xf32> to vector<1x1xf32>
    %233 = vector.broadcast %232 : vector<1x1xf32> to vector<1x8xf32>
    %234 = vector.broadcast %cst_65 : f32 to vector<1x8xf32>
    %235 = arith.select %230, %233, %234 : vector<1x8xi1>, vector<1x8xf32>
    %236 = arith.addf %228, %235 : vector<1x8xf32>
    %c0_66 = arith.constant 0 : index
    %c0_67 = arith.constant 0 : index
    %237 = vector.load %arg4[%c0_66, %c0_67] : memref<1x8xf32, #tpu.memory_space<vmem>>, vector<1x8xf32>
    tpu.vector_store %arg4[%c0_66, %c0_67], %236 {strides = array<i32>} : memref<1x8xf32, #tpu.memory_space<vmem>>, vector<1x8xf32>,
    return
  }
}

</mosaic_0001>

<llo_original>
// kernel: combined_violation_normal_loss.1
$region0: #{combined_violation_normal_loss.1}
  #allocation0 [shape = 'u32[]', space=smem, size = 0x4, offset = 0x4, fixed_abs, tag = 'smem constant byte address 0x4 - core index']
  #allocation1 [shape = 'u32[144,128]{1,0:T(1,128)}', space=vmem, size = 0x12000, scoped, tag = 'internal scratch']
  #allocation2 [shape = 'f32[16,32]{1,0:T(8,128)}', space=vmem, size = 0x2000, scoped, tag = 'scratch operand']
  %s0 = inlined_call_operand.vmem [shape: f32[16,4], index: 0, kind: input, shape index: {}]
  %s1 = inlined_call_operand.vmem [shape: f32[16,32], index: 1, kind: input, shape index: {}]
  %s2 = inlined_call_operand.vmem [shape: s32[16,1], index: 2, kind: input, shape index: {}]
  %s3 = inlined_call_operand.vmem [shape: s32[1,16], index: 3, kind: input, shape index: {}]
  %s4 = inlined_call_operand.vmem [shape: f32[1,8], index: 4, kind: output, shape index: {}]
  %s5 = sld [smem:[#allocation0]]
  $region33: #{combined_violation_normal_loss.1} parent=0
    _
  %s7 = ssub.s32 1, %s5
  %s8 = scalar_select 0, %s7, %s5
  // Predicated region
  $region2: #{combined_violation_normal_loss.1} parent=0 // pred_check
    _
  $region3: #{combined_violation_normal_loss.1} parent=0 // pred_check_branch
    %10 = sbr.rel (0) target = $region5
  $region4: #{combined_violation_normal_loss.1} parent=0 // pred_region
    _
  $region5: #{combined_violation_normal_loss.1} parent=0 // pred_fallthru
    _
  // Predicated region
  $region6: #{combined_violation_normal_loss.1} parent=0 // pred_check
    _
  $region7: #{combined_violation_normal_loss.1} parent=0 // pred_check_branch
    %12 = sbr.rel (0) target = $region9
  $region8: #{combined_violation_normal_loss.1} parent=0 // pred_region
    _
  $region9: #{combined_violation_normal_loss.1} parent=0 // pred_fallthru
    _
  // Predicated region
  $region10: #{combined_violation_normal_loss.1} parent=0 // pred_check
    _
  $region11: #{combined_violation_normal_loss.1} parent=0 // pred_check_branch
    %14 = sbr.rel (0) target = $region13
  $region12: #{combined_violation_normal_loss.1} parent=0 // pred_region
    _
  $region13: #{combined_violation_normal_loss.1} parent=0 // pred_fallthru
    _
  // Predicated region
  $region14: #{combined_violation_normal_loss.1} parent=0 // pred_check
    _
  $region15: #{combined_violation_normal_loss.1} parent=0 // pred_check_branch
    %16 = sbr.rel (0) target = $region17
  $region16: #{combined_violation_normal_loss.1} parent=0 // pred_region
    _
  $region17: #{combined_violation_normal_loss.1} parent=0 // pred_fallthru
    _
  %v17 = vld [vmem:[%s0] sm:$0xff]
  %v18 = vld [vmem:[%s0 + $0x8] sm:$0xff]
  %v19 = vld [vmem:[%s2] sm:$0xff]
  %v20 = vld [vmem:[%s2 + $0x8] sm:$0xff]
  %vm21 = vcmp.eq.s32.totalorder %v19, 0
  %vm22 = vcmp.eq.s32.totalorder %v20, 0
  %v23 = vsel %vm21, 1, 0
  %v24 = vsel %vm22, 1, 0
  %v25 = vcvt.s32.f32 %v23
  %v26 = vcvt.s32.f32 %v24
  %vm27 = vcmp.eq.s32.totalorder %v19, 2
  %vm28 = vcmp.eq.s32.totalorder %v20, 2
  %v29 = vsel %vm27, 1, 0
  %v30 = vsel %vm28, 1, 0
  %v31 = vcvt.s32.f32 %v29
  %v32 = vcvt.s32.f32 %v30
  %vm33 = vcmask 7168
  %v34 = vsel %vm33, %v25, 0.0
  %v35 = vsel %vm33, %v26, 0.0
  %v36 = vadd.f32 %v34, %v35
  %v37 = vrot.slane %v36, 4
  %v38 = vadd.f32 %v36, %v37
  %v39 = vrot.slane %v38, 2
  %v40 = vadd.f32 %v38, %v39
  %v41 = vrot.slane %v40, 1
  %v42 = vadd.f32 %v40, %v41
  %v43 = vsel %vm33, %v31, 0.0
  %v44 = vsel %vm33, %v32, 0.0
  %v45 = vadd.f32 %v43, %v44
  %v46 = vrot.slane %v45, 4
  %v47 = vadd.f32 %v45, %v46
  %v48 = vrot.slane %v47, 2
  %v49 = vadd.f32 %v47, %v48
  %v50 = vrot.slane %v49, 1
  %v51 = vadd.f32 %v49, %v50
  %v52 = vmax.f32 %v42, 1.0
  %v53 = vrcp.pop %v52
  %v54 = vmul.f32 1.0, %v53
  %v55 = vmax.f32 %v51, 1.0
  %v56 = vrcp.pop %v55
  %v57 = vmul.f32 1.0, %v56
  %vm58 = vcmp.gt.f32.partialorder %v42, 0.0
  %v59 = vsel %vm58, 1, 0
  %v60 = vcvt.s32.f32 %v59
  %vm61 = vcmp.gt.f32.partialorder %v51, 0.0
  %v62 = vsel %vm61, 1, 0
  %v63 = vcvt.s32.f32 %v62
  %v64 = vmul.f32 %v60, %v63
  %vm65 = vcmp.gt.f32.partialorder %v42, 1.0
  %v66 = vsel %vm65, 1, 0
  %v67 = vcvt.s32.f32 %v66
  %vm68 = vcmp.gt.f32.partialorder %v51, 1.0
  %v69 = vsel %vm68, 1, 0
  %v70 = vcvt.s32.f32 %v69
  %v71 = vlaneseq
  %v72 = vshrl.u32 %v71, 7
  %v73 = vadd.s32 %v72, 8
  %vm74 = vcmp.lt.s32.totalorder %v72, 14
  %vm75 = vcmp.lt.s32.totalorder %v73, 14
  %v76 = vsel %vm74, 1, 0
  %v77 = vsel %vm75, 1, 0
  %v78 = vcvt.s32.f32 %v76
  %v79 = vcvt.s32.f32 %v77
  %vm80 = vcmask 31744
  %v81 = vsel %vm80, %v17, -inf
  %82 = vmax.xlane.f32.xlu0 %v81
  %v83 = vpop.xlane.xlu0 %82
  %v84 = vsel %vm80, %v18, -inf
  %85 = vmax.xlane.f32.xlu0 %v84
  %v86 = vpop.xlane.xlu0 %85
  %v87 = vsub.f32 %v17, %v83
  %v88 = vsub.f32 %v18, %v86
  %v89 = vmul.f32 %v87, 1.442695
  %v90 = vpow.pop %v89
  %v91 = vmul.f32 %v88, 1.442695
  %v92 = vpow.pop %v91
  %v93 = vsel %vm80, %v90, 0.0
  %94 = vadd.xlane.f32.xlu0 %v93
  %v95 = vpop.xlane.xlu0 %94
  %v96 = vsel %vm80, %v92, 0.0
  %97 = vadd.xlane.f32.xlu0 %v96
  %v98 = vpop.xlane.xlu0 %97
  %v99 = vlog2.pop %v95
  %v100 = vmul.f32 %v99, 0.6931472
  %v101 = vlog2.pop %v98
  %v102 = vmul.f32 %v101, 0.6931472
  %v103 = vadd.f32 %v83, %v100
  %v104 = vadd.f32 %v86, %v102
  %v105 = vlaneseq
  %v106 = vand.u32 %v105, 127
  %107 = vset.pattern.permute.xlu0 0
  %108 = vperm.xlu0 %107, %v19
  %v109 = vpop.permute.xlu0 %108
  %110 = vset.pattern.permute.xlu0 0
  %111 = vperm.xlu0 %110, %v20
  %v112 = vpop.permute.xlu0 %111
  %vm113 = vcmp.eq.s32.totalorder %v106, %v109
  %vm114 = vcmp.eq.s32.totalorder %v106, %v112
  %v115 = vsel %vm113, 1, 0
  %v116 = vsel %vm114, 1, 0
  %v117 = vcvt.s32.f32 %v115
  %v118 = vcvt.s32.f32 %v116
  %v119 = vmul.f32 %v17, %v117
  %v120 = vmul.f32 %v18, %v118
  %v121 = vsel %vm80, %v119, 0.0
  %122 = vadd.xlane.f32.xlu0 %v121
  %v123 = vpop.xlane.xlu0 %122
  %v124 = vsel %vm80, %v120, 0.0
  %125 = vadd.xlane.f32.xlu0 %v124
  %v126 = vpop.xlane.xlu0 %125
  %v127 = vsub.f32 %v103, %v123
  %v128 = vsub.f32 %v104, %v126
  %v129 = vsub.f32 0.0, %v127
  %v130 = vsub.f32 0.0, %v128
  %v131 = vmul.f32 %v129, 1.442695
  %v132 = vpow.pop %v131
  %v133 = vmul.f32 %v130, 1.442695
  %v134 = vpow.pop %v133
  %v135 = vsub.f32 1.0, %v132
  %v136 = vsub.f32 1.0, %v134
  %v137 = vmul.f32 %v135, %v135
  %v138 = vmul.f32 %v136, %v136
  %v139 = vmul.f32 %v137, %v135
  %v140 = vmul.f32 %v138, %v136
  %v141 = vsel %vm27, 3.0, 1.0
  %v142 = vsel %vm28, 3.0, 1.0
  %v143 = vsel %vm27, %v139, %v137
  %v144 = vsel %vm28, %v140, %v138
  %v145 = vmul.f32 %v141, %v143
  %v146 = vmul.f32 %v142, %v144
  %v147 = vmul.f32 %v145, %v127
  %v148 = vmul.f32 %v146, %v128
  %v149 = vmul.f32 %v147, %v78
  %v150 = vmul.f32 %v148, %v79
  %v151 = vsel %vm33, %v149, 0.0
  %v152 = vsel %vm33, %v150, 0.0
  %v153 = vadd.f32 %v151, %v152
  %v154 = vrot.slane %v153, 4
  %v155 = vadd.f32 %v153, %v154
  %v156 = vrot.slane %v155, 2
  %v157 = vadd.f32 %v155, %v156
  %v158 = vrot.slane %v157, 1
  %v159 = vadd.f32 %v157, %v158
  %v160 = vmul.f32 %v159, 0.071428575
  %v161 = vld [vmem:[%s1] sm:$0xff]
  %v162 = vld [vmem:[%s1 + $0x8] sm:$0xff]
  %v163 = vmul.f32 %v161, %v161
  %v164 = vmul.f32 %v162, %v162
  %vm165 = vcmask 261120
  %v166 = vsel %vm165, %v163, 0.0
  %167 = vadd.xlane.f32.xlu0 %v166
  %v168 = vpop.xlane.xlu0 %167
  %v169 = vsel %vm165, %v164, 0.0
  %170 = vadd.xlane.f32.xlu0 %v169
  %v171 = vpop.xlane.xlu0 %170
  %v172 = vmax.f32 %v168, 1e-24
  %v173 = vmax.f32 %v171, 1e-24
  %v174 = vrsqrt.pop %v172
  %v175 = vrsqrt.pop %v173
  %v176 = vmul.f32 %v161, %v174
  %v177 = vmul.f32 %v162, %v175
  %178 = vst.msk [vmem:[#allocation2] sm:$0xff] %vm165, %v176
  %179 = vst.msk [vmem:[#allocation2 + $0x8] sm:$0xff] %vm165, %v177
  %182 = vrot.lane.b32.xlu0 %v17, 2
  %v183 = vpop.permute.xlu0 %182
  %184 = vrot.lane.b32.xlu0 %v18, 2
  %v185 = vpop.permute.xlu0 %184
  %v188 = vsub.f32 %v17, %v183
  %v189 = vsub.f32 %v18, %v185
  %v190 = vadd.f32 %v188, 2.0
  %v191 = vadd.f32 %v189, 2.0
  %v192 = vmax.f32 %v190, 0.0
  %v193 = vmax.f32 %v191, 0.0
  %196 = vrot.lane.b32.xlu0 %v25, 2
  %v197 = vpop.permute.xlu0 %196
  %198 = vrot.lane.b32.xlu0 %v26, 2
  %v199 = vpop.permute.xlu0 %198
  %v202 = vmul.f32 %v192, %v197
  %v203 = vmul.f32 %v193, %v199
  %vm204 = vcmask 23568
  %v205 = vsel %vm204, %v202, 0.0
  %v206 = vsel %vm204, %v203, 0.0
  %v207 = vadd.f32 %v205, %v206
  %v208 = vrot.slane %v207, 4
  %v209 = vadd.f32 %v207, %v208
  %v210 = vrot.slane %v209, 2
  %v211 = vadd.f32 %v209, %v210
  %v212 = vrot.slane %v211, 1
  %v213 = vadd.f32 %v211, %v212
  %215 = vrot.lane.b32.xlu0 %v54, 2
  %v216 = vpop.permute.xlu0 %215
  %v218 = vmul.f32 %v213, %v216
  %219 = vrot.lane.b32.xlu0 %v17, 126
  %v220 = vpop.permute.xlu0 %219
  %221 = vrot.lane.b32.xlu0 %v18, 126
  %v222 = vpop.permute.xlu0 %221
  %v225 = vsub.f32 %v17, %v220
  %v226 = vsub.f32 %v18, %v222
  %v227 = vadd.f32 %v225, 2.0
  %v228 = vadd.f32 %v226, 2.0
  %v229 = vmax.f32 %v227, 0.0
  %v230 = vmax.f32 %v228, 0.0
  %v231 = vmul.f32 %v229, %v31
  %v232 = vmul.f32 %v230, %v32
  %v233 = vsel %vm33, %v231, 0.0
  %v234 = vsel %vm33, %v232, 0.0
  %v235 = vadd.f32 %v233, %v234
  %v236 = vrot.slane %v235, 4
  %v237 = vadd.f32 %v235, %v236
  %v238 = vrot.slane %v237, 2
  %v239 = vadd.f32 %v237, %v238
  %v240 = vrot.slane %v239, 1
  %v241 = vadd.f32 %v239, %v240
  %v242 = vmul.f32 %v241, %v57
  %244 = vrot.lane.b32.xlu0 %v218, 126
  %v245 = vpop.permute.xlu0 %244
  %v247 = vmul.f32 %v60, %v245
  %v248 = vmul.f32 %v63, %v242
  %v249 = vadd.f32 %v247, %v248
  %250 = vset.pattern.permute.xlu0 0
  %251 = vperm.xlu0 %250, %v25
  %v252 = vpop.permute.xlu0 %251
  %254 = vset.pattern.permute.xlu0 0
  %255 = vperm.xlu0 %254, %v26
  %v256 = vpop.permute.xlu0 %255
  %v258 = vmul.f32 %v176, %v252
  %v259 = vmul.f32 %v177, %v256
  %v260 = vsel %vm165, %v258, 0.0
  %v261 = vsel %vm165, %v259, 0.0
  %v262 = vadd.f32 %v260, %v261
  %v263 = vrot.slane %v262, 4
  %v264 = vadd.f32 %v262, %v263
  %v265 = vrot.slane %v264, 2
  %v266 = vadd.f32 %v264, %v265
  %v267 = vrot.slane %v266, 1
  %v268 = vadd.f32 %v266, %v267
  %269 = vset.pattern.permute.xlu0 0
  %270 = vperm.xlu0 %269, %v54
  %v271 = vpop.permute.xlu0 %270
  %v273 = vmul.f32 %v268, %v271
  %275 = vset.pattern.permute.xlu0 0
  %276 = vperm.xlu0 %275, %v31
  %v277 = vpop.permute.xlu0 %276
  %280 = vset.pattern.permute.xlu0 0
  %281 = vperm.xlu0 %280, %v32
  %v282 = vpop.permute.xlu0 %281
  %v284 = vmul.f32 %v176, %v277
  %v285 = vmul.f32 %v177, %v282
  %v286 = vsel %vm165, %v284, 0.0
  %v287 = vsel %vm165, %v285, 0.0
  %v288 = vadd.f32 %v286, %v287
  %v289 = vrot.slane %v288, 4
  %v290 = vadd.f32 %v288, %v289
  %v291 = vrot.slane %v290, 2
  %v292 = vadd.f32 %v290, %v291
  %v293 = vrot.slane %v292, 1
  %v294 = vadd.f32 %v292, %v293
  %296 = vset.pattern.permute.xlu0 0
  %297 = vperm.xlu0 %296, %v57
  %v298 = vpop.permute.xlu0 %297
  %v300 = vmul.f32 %v294, %v298
  %v301 = vsub.f32 %v176, %v273
  %v302 = vsub.f32 %v177, %v273
  %v303 = vadd.f32 %v301, 1e-06
  %v304 = vadd.f32 %v302, 1e-06
  %v305 = vsub.f32 %v176, %v300
  %v306 = vsub.f32 %v177, %v300
  %v307 = vadd.f32 %v305, 1e-06
  %v308 = vadd.f32 %v306, 1e-06
  %v309 = vmul.f32 %v303, %v303
  %v310 = vmul.f32 %v304, %v304
  %v311 = vsel %vm165, %v309, 0.0
  %312 = vadd.xlane.f32.xlu0 %v311
  %v313 = vpop.xlane.xlu0 %312
  %v314 = vsel %vm165, %v310, 0.0
  %315 = vadd.xlane.f32.xlu0 %v314
  %v316 = vpop.xlane.xlu0 %315
  %v317 = vrsqrt.pop %v313
  %v318 = vmul.f32 %v313, %v317
  %vm319 = vcmp.eq.f32.partialorder %v313, inf
  %v320 = vsel %vm319, %v313, %v318
  %vm321 = vcmp.eq.f32.partialorder %v313, 0.0
  %v322 = vand.u32 %v313, 2147483648
  %v323 = vsel %vm321, %v322, %v320
  %v324 = vrsqrt.pop %v316
  %v325 = vmul.f32 %v316, %v324
  %vm326 = vcmp.eq.f32.partialorder %v316, inf
  %v327 = vsel %vm326, %v316, %v325
  %vm328 = vcmp.eq.f32.partialorder %v316, 0.0
  %v329 = vand.u32 %v316, 2147483648
  %v330 = vsel %vm328, %v329, %v327
  %v331 = vmul.f32 %v307, %v307
  %v332 = vmul.f32 %v308, %v308
  %v333 = vsel %vm165, %v331, 0.0
  %334 = vadd.xlane.f32.xlu0 %v333
  %v335 = vpop.xlane.xlu0 %334
  %v336 = vsel %vm165, %v332, 0.0
  %337 = vadd.xlane.f32.xlu0 %v336
  %v338 = vpop.xlane.xlu0 %337
  %v339 = vrsqrt.pop %v335
  %v340 = vmul.f32 %v335, %v339
  %vm341 = vcmp.eq.f32.partialorder %v335, inf
  %v342 = vsel %vm341, %v335, %v340
  %vm343 = vcmp.eq.f32.partialorder %v335, 0.0
  %v344 = vand.u32 %v335, 2147483648
  %v345 = vsel %vm343, %v344, %v342
  %v346 = vrsqrt.pop %v338
  %v347 = vmul.f32 %v338, %v346
  %vm348 = vcmp.eq.f32.partialorder %v338, inf
  %v349 = vsel %vm348, %v338, %v347
  %vm350 = vcmp.eq.f32.partialorder %v338, 0.0
  %v351 = vand.u32 %v338, 2147483648
  %v352 = vsel %vm350, %v351, %v349
  %v353 = vsub.f32 %v323, %v345
  %v354 = vsub.f32 %v330, %v352
  %v355 = vadd.f32 %v353, 1.0
  %v356 = vadd.f32 %v354, 1.0
  %v357 = vmax.f32 %v355, 0.0
  %v358 = vmax.f32 %v356, 0.0
  %v359 = vmul.f32 %v357, %v25
  %v360 = vmul.f32 %v358, %v26
  %v361 = vsel %vm33, %v359, 0.0
  %v362 = vsel %vm33, %v360, 0.0
  %v363 = vadd.f32 %v361, %v362
  %v364 = vrot.slane %v363, 4
  %v365 = vadd.f32 %v363, %v364
  %v366 = vrot.slane %v365, 2
  %v367 = vadd.f32 %v365, %v366
  %v368 = vrot.slane %v367, 1
  %v369 = vadd.f32 %v367, %v368
  %v370 = vmul.f32 %v369, %v54
  %v371 = vsub.f32 %v345, %v323
  %v372 = vsub.f32 %v352, %v330
  %v373 = vadd.f32 %v371, 1.0
  %v374 = vadd.f32 %v372, 1.0
  %v375 = vmax.f32 %v373, 0.0
  %v376 = vmax.f32 %v374, 0.0
  %v377 = vmul.f32 %v375, %v31
  %v378 = vmul.f32 %v376, %v32
  %v379 = vsel %vm33, %v377, 0.0
  %v380 = vsel %vm33, %v378, 0.0
  %v381 = vadd.f32 %v379, %v380
  %v382 = vrot.slane %v381, 4
  %v383 = vadd.f32 %v381, %v382
  %v384 = vrot.slane %v383, 2
  %v385 = vadd.f32 %v383, %v384
  %v386 = vrot.slane %v385, 1
  %v387 = vadd.f32 %v385, %v386
  %v388 = vmul.f32 %v387, %v57
  %v389 = vadd.f32 %v370, %v388
  loop: start=0, step=1, limit=2
  $region18: #{combined_violation_normal_loss.1} parent=0 // loop_pre_header
    _
  $region19: #{combined_violation_normal_loss.1} parent=0 // loop_header
    %s391 = sphi 0, %s395
    %p392 = scmp.ge.s32.totalorder %s391, 2
    %v396 = vphi 0.0, %v552
    %v397 = vphi 0.0, %v561
    %v398 = vphi 0.0, %v570
  $region20: #{combined_violation_normal_loss.1} parent=0 // loop_header_branch
    %394 = sbr.rel (%p392) target = $region24
  $region21: #{combined_violation_normal_loss.1} parent=0 // loop_body
    %s399 = smul.u32 %s391, 8
    %s400 = scalar_lea.vmem [#allocation2], %s399
    %v401 = vld [vmem:[%s400] sm:$0xff]
    %v402 = vmul.f32 %v401, 14.285714
    %v403 = vld [vmem:[#allocation2] sm:$0xff]
    %v404 = vld [vmem:[#allocation2 + $0x8] sm:$0xff]
    %v406 = vsel %vm165, %v402, 0
    %v409 = vsel %vm165, %v403, 0
    %v412 = vsel %vm165, %v404, 0
    %414 = vmatprep.subr.mxu0 0.0
    %415 = vmatpush1.xpose.msra.mxu0 %v409
    %416 = vmatprep.subr.mxu0 0.0
    %417 = vmatpush1.xpose.msra.mxu0 %v412
    %418 = vmatprep.subr.mxu0 0.0
    %419 = vmatpush1.xpose.msra.mxu0 0.0
    %420 = vmatprep.subr.mxu0 0.0
    %421 = vmatpush1.xpose.msra.mxu0 0.0
    %422 = vmatprep.subr.mxu0 0.0
    %423 = vmatpush1.xpose.msra.mxu0 0.0
    %424 = vmatprep.subr.mxu0 0.0
    %425 = vmatpush1.xpose.msra.mxu0 0.0
    %426 = vmatprep.subr.mxu0 0.0
    %427 = vmatpush1.xpose.msra.mxu0 0.0
    %428 = vmatprep.subr.mxu0 0.0
    %429 = vmatpush1.xpose.msra.mxu0 0.0
    %430 = vmatprep.subr.mxu0 0.0
    %431 = vmatpush1.xpose.msra.mxu0 0.0
    %432 = vmatprep.subr.mxu0 0.0
    %433 = vmatpush1.xpose.msra.mxu0 0.0
    %434 = vmatprep.subr.mxu0 0.0
    %435 = vmatpush1.xpose.msra.mxu0 0.0
    %436 = vmatprep.subr.mxu0 0.0
    %437 = vmatpush1.xpose.msra.mxu0 0.0
    %438 = vmatprep.subr.mxu0 0.0
    %439 = vmatpush1.xpose.msra.mxu0 0.0
    %440 = vmatprep.subr.mxu0 0.0
    %441 = vmatpush1.xpose.msra.mxu0 0.0
    %442 = vmatprep.subr.mxu0 0.0
    %443 = vmatpush1.xpose.msra.mxu0 0.0
    %444 = vmatprep.subr.mxu0 0.0
    %445 = vmatpush1.xpose.msra.mxu0 0.0
    %446 = vmatprep.subr.mxu0 0.0
    %447 = vmatpush1.xpose.msra.mxu0 0.0
    %448 = vmatprep.subr.mxu0 0.0
    %449 = vmatpush1.xpose.msra.mxu0 0.0
    %450 = vmatprep.subr.mxu0 0.0
    %451 = vmatpush1.xpose.msra.mxu0 0.0
    %452 = vmatprep.subr.mxu0 0.0
    %453 = vmatpush1.xpose.msra.mxu0 0.0
    %454 = vmatprep.subr.mxu0 0.0
    %455 = vmatpush1.xpose.msra.mxu0 0.0
    %456 = vmatprep.subr.mxu0 0.0
    %457 = vmatpush1.xpose.msra.mxu0 0.0
    %458 = vmatprep.subr.mxu0 0.0
    %459 = vmatpush1.xpose.msra.mxu0 0.0
    %460 = vmatprep.subr.mxu0 0.0
    %461 = vmatpush1.xpose.msra.mxu0 0.0
    %462 = vmatprep.subr.mxu0 0.0
    %463 = vmatpush1.xpose.msra.mxu0 0.0
    %464 = vmatprep.subr.mxu0 0.0
    %465 = vmatpush1.xpose.msra.mxu0 0.0
    %466 = vmatprep.subr.mxu0 0.0
    %467 = vmatpush1.xpose.msra.mxu0 0.0
    %468 = vmatprep.subr.mxu0 0.0
    %469 = vmatpush1.xpose.msra.mxu0 0.0
    %470 = vmatprep.subr.mxu0 0.0
    %471 = vmatpush1.xpose.msra.mxu0 0.0
    %472 = vmatprep.subr.mxu0 0.0
    %473 = vmatpush1.xpose.msra.mxu0 0.0
    %474 = vmatprep.subr.mxu0 0.0
    %475 = vmatpush1.xpose.msra.mxu0 0.0
    %476 = vmatprep.subr.mxu0 0.0
    %477 = vmatpush1.xpose.msra.mxu0 0.0
    %478 = vmatprep.mubr.f32.mxu0 0.0
    %479 = vmatmul.mubr.f32.gmra.mrb[0].mxu0 %v406
    %v480 = vpop.f32.mrb[0].mxu0
    %v481 = vadd.f32 0.0, %v480
    %v482 = vpop.f32.mrb[0].mxu0
    %483 = vdwg.mxu0
    %v484 = vld [vmem:[%s3] sm:$0x1]
    %vm485 = vcmp.eq.s32.totalorder %v484, 2
    %vm486 = vcmp.eq.s32.totalorder %v484, 0
    %v487 = vstv %s399
    %v488 = vadd.s32 %v487, %v72
    %vm489 = vcmp.eq.s32.totalorder %v488, %v106
    %v490 = vsel %vm489, -1e+30, %v481
    %v491 = vsel %vm485, 1, 0
    %v492 = vlaneseq
    %v493 = vshrl.u32 %v492, 7
    %v494 = vsub.s32 0, %v493
    %v495 = vrot.slane %v491, %v494
    %vm496 = vcmp.eq.s32.totalorder %v495, 1
    %v497 = vsel %vm496, %v490, -1e+30
    %vm498 = vcmask 130048
    %v499 = vsel %vm498, %v497, -inf
    %500 = vmax.xlane.f32.xlu0 %v499
    %v501 = vpop.xlane.xlu0 %500
    %v502 = vsel %vm486, 1, 0
    %v503 = vlaneseq
    %v504 = vshrl.u32 %v503, 7
    %v505 = vsub.s32 0, %v504
    %v506 = vrot.slane %v502, %v505
    %vm507 = vcmp.eq.s32.totalorder %v506, 1
    %v508 = vsel %vm507, %v481, -1e+30
    %v509 = vsel %vm498, %v508, -inf
    %510 = vmax.xlane.f32.xlu0 %v509
    %v511 = vpop.xlane.xlu0 %510
    %v512 = vsel %vm507, %v490, -1e+30
    %v513 = vsel %vm498, %v512, -inf
    %514 = vmax.xlane.f32.xlu0 %v513
    %v515 = vpop.xlane.xlu0 %514
    %v516 = vsel %vm496, %v481, -1e+30
    %v517 = vsel %vm498, %v516, -inf
    %518 = vmax.xlane.f32.xlu0 %v517
    %v519 = vpop.xlane.xlu0 %518
    %vm520 = vcmp.gt.f32.partialorder %v501, -5e+29
    %v521 = vsub.f32 %v511, %v501
    %v522 = vadd.f32 %v521, 1.0
    %v523 = vmax.f32 %v522, 0.0
    %v524 = vsel %vm520, %v523, 0.0
    %vm525 = vcmp.gt.f32.partialorder %v515, -5e+29
    %v526 = vsub.f32 %v519, %v515
    %v527 = vadd.f32 %v526, 1.0
    %v528 = vmax.f32 %v527, 0.0
    %v529 = vsel %vm525, %v528, 0.0
    %s530 = scalar_lea.vmem %s2, %s399
    %v531 = vld [vmem:[%s530] sm:$0xff]
    %vm532 = vcmp.eq.s32.totalorder %v531, 2
    %v533 = vsel %vm532, 1, 0
    %v534 = vcvt.s32.f32 %v533
    %vm535 = vcmp.eq.s32.totalorder %v531, 0
    %v536 = vsel %vm535, 1, 0
    %v537 = vcvt.s32.f32 %v536
    %v538 = vadd.f32 %v481, 1.0
    %v539 = vmax.f32 %v538, 0.0
    %v540 = vsel %vm507, %v539, 0.0
    %v541 = vsel %vm498, %v540, 0.0
    %542 = vadd.xlane.f32.xlu0 %v541
    %v543 = vpop.xlane.xlu0 %542
    %v544 = vmul.f32 %v524, %v534
    %v545 = vsel %vm33, %v544, 0.0
    %v546 = vrot.slane %v545, 4
    %v547 = vadd.f32 %v545, %v546
    %v548 = vrot.slane %v547, 2
    %v549 = vadd.f32 %v547, %v548
    %v550 = vrot.slane %v549, 1
    %v551 = vadd.f32 %v549, %v550
    %v552 = vadd.f32 %v396, %v551
    %v553 = vmul.f32 %v529, %v537
    %v554 = vsel %vm33, %v553, 0.0
    %v555 = vrot.slane %v554, 4
    %v556 = vadd.f32 %v554, %v555
    %v557 = vrot.slane %v556, 2
    %v558 = vadd.f32 %v556, %v557
    %v559 = vrot.slane %v558, 1
    %v560 = vadd.f32 %v558, %v559
    %v561 = vadd.f32 %v397, %v560
    %v562 = vmul.f32 %v543, %v534
    %v563 = vsel %vm33, %v562, 0.0
    %v564 = vrot.slane %v563, 4
    %v565 = vadd.f32 %v563, %v564
    %v566 = vrot.slane %v565, 2
    %v567 = vadd.f32 %v565, %v566
    %v568 = vrot.slane %v567, 1
    %v569 = vadd.f32 %v567, %v568
    %v570 = vadd.f32 %v398, %v569
  $region22: #{combined_violation_normal_loss.1} parent=0 // loop_footer
    %s395 = sadd.s32 1, %s391
  $region23: #{combined_violation_normal_loss.1} parent=0 // loop_footer_branch
    %390 = sbr.rel target = $region19
  $region24: #{combined_violation_normal_loss.1} parent=0 // loop_exit
    _
  %v571 = vmul.f32 %v51, %v42
  %v572 = vmax.f32 %v571, 1.0
  %v573 = vrcp.pop %v572
  %v574 = vmul.f32 1.0, %v573
  %v575 = vmul.f32 %v398, %v574
  %v576 = vmul.f32 %v70, %v396
  %v577 = vmul.f32 %v576, %v57
  %v578 = vmul.f32 %v67, %v397
  %v579 = vmul.f32 %v578, %v54
  %v580 = vadd.f32 %v577, %v579
  %v581 = vadd.f32 %v580, %v575
  %vm582 = vcmp.gt.f32.partialorder %v64, 0.0
  %v583 = vmul.f32 %v581, 0.5
  %v584 = vadd.f32 %v160, %v583
  %v585 = vsel %vm582, %v584, %v160
  %v586 = vmul.f32 %v249, 0.3
  %v587 = vadd.f32 %v585, %v586
  %v588 = vmul.f32 %v64, 0.2
  %v589 = vmul.f32 %v588, %v389
  %v590 = vadd.f32 %v587, %v589
  %vm591 = vcmp.eq.s32.totalorder %v106, 0
  %593 = vset.pattern.permute.xlu0 0
  %594 = vperm.xlu0 %593, %v590
  %v595 = vpop.permute.xlu0 %594
  %v597 = vsel %vm591, %v595, 0.0
  %vm598 = vcmp.eq.s32.totalorder %v106, 1
  %600 = vset.pattern.permute.xlu0 0
  %601 = vperm.xlu0 %600, %v160
  %v602 = vpop.permute.xlu0 %601
  %v604 = vsel %vm598, %v602, 0.0
  %v605 = vadd.f32 %v597, %v604
  %vm606 = vcmp.eq.s32.totalorder %v106, 2
  %v607 = vmul.f32 %v64, %v581
  %609 = vset.pattern.permute.xlu0 0
  %610 = vperm.xlu0 %609, %v607
  %v611 = vpop.permute.xlu0 %610
  %v613 = vsel %vm606, %v611, 0.0
  %v614 = vadd.f32 %v605, %v613
  %vm615 = vcmp.eq.s32.totalorder %v106, 3
  %617 = vset.pattern.permute.xlu0 0
  %618 = vperm.xlu0 %617, %v249
  %v619 = vpop.permute.xlu0 %618
  %v621 = vsel %vm615, %v619, 0.0
  %v622 = vadd.f32 %v614, %v621
  %vm623 = vcmp.eq.s32.totalorder %v106, 4
  %v624 = vmul.f32 %v64, %v389
  %626 = vset.pattern.permute.xlu0 0
  %627 = vperm.xlu0 %626, %v624
  %v628 = vpop.permute.xlu0 %627
  %v630 = vsel %vm623, %v628, 0.0
  %v631 = vadd.f32 %v622, %v630
  %vm632 = vcmp.eq.s32.totalorder %v106, 5
  %v633 = vmul.f32 %v64, %v575
  %635 = vset.pattern.permute.xlu0 0
  %636 = vperm.xlu0 %635, %v633
  %v637 = vpop.permute.xlu0 %636
  %v639 = vsel %vm632, %v637, 0.0
  %v640 = vadd.f32 %v631, %v639
  %vm641 = vcmask 57344
  %642 = vst.msk [vmem:[%s4] sm:$0x1] %vm641, %v640
  // Predicated region
  $region25: #{combined_violation_normal_loss.1} parent=0 // pred_check
    _
  $region26: #{combined_violation_normal_loss.1} parent=0 // pred_check_branch
    %644 = sbr.rel (0) target = $region28
  $region27: #{combined_violation_normal_loss.1} parent=0 // pred_region
    _
  $region28: #{combined_violation_normal_loss.1} parent=0 // pred_fallthru
    _
  // Predicated region
  $region29: #{combined_violation_normal_loss.1} parent=0 // pred_check
    _
  $region30: #{combined_violation_normal_loss.1} parent=0 // pred_check_branch
    %646 = sbr.rel (0) target = $region32
  $region31: #{combined_violation_normal_loss.1} parent=0 // pred_region
    _
  $region32: #{combined_violation_normal_loss.1} parent=0 // pred_fallthru
    _

</llo_original>
